<compile_context>
chip_gen: v7x
topology: tpu7x:2x2x1
jax: 0.10.0
libtpu: 0.0.40
codegen_flags: <defaults>
</compile_context>

<pallas_src>
import functools

import jax
import jax.numpy as jnp
from jax import lax
from jax.experimental import pallas as pl
from jax.experimental.pallas import tpu as pltpu

ACT_FEAT = 4     # action_latent_features in the PyTorch module
HID = 128        # hidden width
LANE = 128       # TPU lane width


def _cdiv(a, b):
    return -(-a // b)


def _round_up(a, m):
    return _cdiv(a, m) * m


# ----------------------------- Pallas kernels ------------------------------ #
def _hidden_tail(h, w2_ref, b2_ref, w3_ref, b3_ref, w4_ref, b4_ref,
                 w5_ref, b5_ref, o_ref):
    """Layers 2-5 (128->128 ReLU x3, 128->pad_n linear), bf16 MXU / f32 acc."""
    f32, bf16 = jnp.float32, jnp.bfloat16
    h = jnp.maximum(
        jnp.dot(h.astype(bf16), w2_ref[...], preferred_element_type=f32) + b2_ref[...], 0.0)
    h = jnp.maximum(
        jnp.dot(h.astype(bf16), w3_ref[...], preferred_element_type=f32) + b3_ref[...], 0.0)
    h = jnp.maximum(
        jnp.dot(h.astype(bf16), w4_ref[...], preferred_element_type=f32) + b4_ref[...], 0.0)
    out = jnp.dot(h.astype(bf16), w5_ref[...], preferred_element_type=f32) + b5_ref[...]
    o_ref[...] = out.astype(o_ref.dtype)


def _mlp_kernel_discrete(
    idx_ref,      # (blk, 1)      int32  action ids
    s_ref,        # (blk, S)      bf16   state latent
    table_ref,    # (a_pad, 128)  f32    folded emb @ W1a + b1 table
    w1s_ref,      # (S, 128)      bf16
    w2_ref, b2_ref, w3_ref, b3_ref, w4_ref, b4_ref,
    w5_ref, b5_ref,
    o_ref,        # (blk, pad_n)  bf16
):
    f32 = jnp.float32
    blk = idx_ref.shape[0]
    a_pad = table_ref.shape[0]
    # In-kernel embedding/bias gather: one-hot (blk, a_pad) @ table on the MXU.
    lanes = lax.broadcasted_iota(jnp.int32, (blk, a_pad), 1)
    onehot = (lanes == idx_ref[...]).astype(f32)
    t = jnp.dot(onehot, table_ref[...], preferred_element_type=f32)       # (blk, 128)
    # Layer 1: relu(state @ W1s + (emb @ W1a + b1)) — bf16 MXU, f32 accumulate.
    h = jnp.dot(s_ref[...], w1s_ref[...], preferred_element_type=f32) + t
    h = jnp.maximum(h, 0.0)
    _hidden_tail(h, w2_ref, b2_ref, w3_ref, b3_ref, w4_ref, b4_ref,
                 w5_ref, b5_ref, o_ref)


def _mlp_kernel_bias_rows(
    t_ref,        # (blk, 128)  bf16  precomputed action-path bias rows
    s_ref,        # (blk, S)    bf16
    w1s_ref,
    w2_ref, b2_ref, w3_ref, b3_ref, w4_ref, b4_ref,
    w5_ref, b5_ref,
    o_ref,
):
    f32 = jnp.float32
    h = (jnp.dot(s_ref[...], w1s_ref[...], preferred_element_type=f32)
         + t_ref[...].astype(f32))
    h = jnp.maximum(h, 0.0)
    _hidden_tail(h, w2_ref, b2_ref, w3_ref, b3_ref, w4_ref, b4_ref,
                 w5_ref, b5_ref, o_ref)


# --------------------------- pallas_call wrappers --------------------------- #
def _weight_args(p):
    return (p["w1s"], p["w2"], p["b2"], p["w3"], p["b3"],
            p["w4"], p["b4"], p["w5"], p["b5"])


def _weight_specs(S, pad_n):
    cst = lambda shp: pl.BlockSpec(shp, lambda i: (0, 0))   # VMEM-resident across grid
    return [cst((S, HID)),
            cst((HID, HID)), cst((1, HID)),
            cst((HID, HID)), cst((1, HID)),
            cst((HID, HID)), cst((1, HID)),
            cst((HID, pad_n)), cst((1, pad_n))]


def _fused_mlp_discrete(idx, state_bf16, p, block_b):
    B, S = state_bf16.shape            # B is already padded to a block multiple
    pad_n = p["w5"].shape[1]
    a_pad = p["action_table"].shape[0]
    row = lambda n: pl.BlockSpec((block_b, n), lambda i: (i, 0))
    cst = lambda shp: pl.BlockSpec(shp, lambda i: (0, 0))
    return pl.pallas_call(
        _mlp_kernel_discrete,
        out_shape=jax.ShapeDtypeStruct((B, pad_n), jnp.bfloat16),
        grid=(B // block_b,),
        in_specs=[row(1), row(S), cst((a_pad, HID))] + _weight_specs(S, pad_n),
        out_specs=row(pad_n),
        compiler_params=pltpu.CompilerParams(dimension_semantics=("parallel",)),
    )(idx, state_bf16, p["action_table"], *_weight_args(p))


def _fused_mlp_bias_rows(t_bf16, state_bf16, p, block_b):
    B, S = state_bf16.shape
    pad_n = p["w5"].shape[1]
    row = lambda n: pl.BlockSpec((block_b, n), lambda i: (i, 0))
    return pl.pallas_call(
        _mlp_kernel_bias_rows,
        out_shape=jax.ShapeDtypeStruct((B, pad_n), jnp.bfloat16),
        grid=(B // block_b,),
        in_specs=[row(HID), row(S)] + _weight_specs(S, pad_n),
        out_specs=row(pad_n),
        compiler_params=pltpu.CompilerParams(dimension_semantics=("parallel",)),
    )(t_bf16, state_bf16, *_weight_args(p))


# ------------------------------ Batch tiling -------------------------------- #
def _choose_block_b(B, S):
    """Pick the batch tile: big (<=2048), VMEM-safe, >=2 blocks for large B."""
    # Cap rows so one bf16 state tile stays ~2 MiB (double-buffered ~4 MiB),
    # inside the default scoped VMEM on v5e (16 MiB) / v6e / v7x (32 MiB).
    cap = (2 * 1024 * 1024) // max(2 * S, 8)
    cap = max(256, min(2048, (cap // 256) * 256))
    if B <= 256:
        return B                      # one full-extent block: no padding needed
    n_blocks = max(2, _cdiv(B, cap))  # >=2 blocks so v7x shards over both TCs
    return min(cap, _round_up(_cdiv(B, n_blocks), 8))


# ------------------------------- Parameters --------------------------------- #
def init_params(key, num_actions, state_latent_features, discrete=True):
    """f32 parameters mirroring the PyTorch module (weights stored (in, out))."""
    A = ACT_FEAT
    S = state_latent_features
    ks = jax.random.split(key, 12)

    def linear_w(k, fan_in, fan_out):
        bound = 1.0 / jnp.sqrt(fan_in)
        return jax.random.uniform(k, (fan_in, fan_out), jnp.float32, -bound, bound)

    def linear_b(k, fan_in, fan_out):
        bound = 1.0 / jnp.sqrt(fan_in)
        return jax.random.uniform(k, (1, fan_out), jnp.float32, -bound, bound)

    params = {}
    if discrete:
        params["embedding"] = jax.random.normal(ks[0], (num_actions, A), jnp.float32)
    else:
        params["enc_w"] = linear_w(ks[0], num_actions, A)
        params["enc_b"] = linear_b(ks[0], num_actions, A)

    w1 = linear_w(ks[1], A + S, HID)
    params["w1a"] = w1[:A]          # (4, 128)
    params["w1s"] = w1[A:]          # (S, 128)
    params["b1"] = linear_b(ks[2], A + S, HID)
    params["w2"] = linear_w(ks[3], HID, HID)
    params["b2"] = linear_b(ks[4], HID, HID)
    params["w3"] = linear_w(ks[5], HID, HID)
    params["b3"] = linear_b(ks[6], HID, HID)
    params["w4"] = linear_w(ks[7], HID, HID)
    params["b4"] = linear_b(ks[8], HID, HID)
    params["w5"] = linear_w(ks[9], HID, S)
    params["b5"] = linear_b(ks[10], HID, S)
    return params


def prepare_params(params, state_latent_features, discrete=True):
    """Kernel-ready params: bf16 weights, lane-padded layer 5, folded action table."""
    S = state_latent_features
    pad_n = _round_up(S, LANE)
    bf16 = jnp.bfloat16
    p = {
        "w1s": params["w1s"].astype(bf16),
        "w2": params["w2"].astype(bf16), "b2": params["b2"],
        "w3": params["w3"].astype(bf16), "b3": params["b3"],
        "w4": params["w4"].astype(bf16), "b4": params["b4"],
    }
    w5p = jnp.zeros((HID, pad_n), jnp.float32).at[:, :S].set(params["w5"])
    b5p = jnp.zeros((1, pad_n), jnp.float32).at[:, :S].set(params["b5"])
    p["w5"] = w5p.astype(bf16)
    p["b5"] = b5p
    if discrete:
        # Fold embedding + W1 action slice + b1 into one small lookup table,
        # kept in f32 (a few KiB; VMEM-resident) and row-padded to a sublane multiple.
        num_actions = params["embedding"].shape[0]
        a_pad = _round_up(num_actions, 8)
        table = params["embedding"] @ params["w1a"] + params["b1"]   # (A, 128)
        p["action_table"] = (jnp.zeros((a_pad, HID), jnp.float32)
                             .at[:num_actions].set(table))
    else:
        p["enc_w"] = params["enc_w"]
        p["enc_b"] = params["enc_b"]
        p["w1a"] = params["w1a"]
        p["b1"] = params["b1"]
    return p


# ----------------------------- Forward wrapper ------------------------------ #
@functools.partial(jax.jit, static_argnames=("discrete",))
def mlp_reconstruct_forward(prepared, state_latent, action, discrete=True):
    """Mirror of MlpReconstructForwardModel.forward (bf16 output)."""
    B, S = state_latent.shape
    block_b = _choose_block_b(B, S)
    b_pad = _round_up(B, block_b) - B

    s = state_latent.astype(jnp.bfloat16)
    if b_pad:
        s = jnp.pad(s, ((0, b_pad), (0, 0)))

    if discrete:
        # 4 B/row of indices replaces the old (B,128) f32 bias stream.
        idx = action.astype(jnp.int32).reshape(-1, 1)
        if b_pad:
            idx = jnp.pad(idx, ((0, b_pad), (0, 0)))
        out = _fused_mlp_discrete(idx, s, prepared, block_b)
    else:
        a = action.reshape(B, -1) @ prepared["enc_w"] + prepared["enc_b"]
        t = (a @ prepared["w1a"] + prepared["b1"]).astype(jnp.bfloat16)   # (B, 128)
        if b_pad:
            t = jnp.pad(t, ((0, b_pad), (0, 0)))
        out = _fused_mlp_bias_rows(t, s, prepared, block_b)

    # Slice stays inside this jit; padded rows / lanes are garbage and dropped.
    return out[:B, :S]


# -------------------------------- References -------------------------------- #
def _reference_forward_f32(params, state_latent, action, discrete=True):
    """Pure-f32 plain-JAX mirror of the PyTorch module semantics."""
    if discrete:
        a = jnp.take(params["embedding"], action.astype(jnp.int32).reshape(-1), axis=0)
    else:
        a = (action @ params["enc_w"] + params["enc_b"]).reshape(-1, ACT_FEAT)
    x = jnp.concatenate([a, state_latent], axis=-1)
    w1 = jnp.concatenate([params["w1a"], params["w1s"]], axis=0)
    h = jnp.maximum(x @ w1 + params["b1"], 0.0)
    h = jnp.maximum(h @ params["w2"] + params["b2"], 0.0)
    h = jnp.maximum(h @ params["w3"] + params["b3"], 0.0)
    h = jnp.maximum(h @ params["w4"] + params["b4"], 0.0)
    return h @ params["w5"] + params["b5"]


def _reference_forward_matched(params, state_latent, action, discrete=True):
    """Plain-JAX mirror of the kernel's bf16-operand / f32-accumulate math."""
    f32, bf16 = jnp.float32, jnp.bfloat16
    if discrete:
        table = params["embedding"] @ params["w1a"] + params["b1"]
        t = jnp.take(table, action.astype(jnp.int32).reshape(-1), axis=0)
    else:
        a = (action @ params["enc_w"] + params["enc_b"]).reshape(-1, ACT_FEAT)
        t = (a @ params["w1a"] + params["b1"]).astype(bf16).astype(f32)
    h = jnp.dot(state_latent.astype(bf16), params["w1s"].astype(bf16),
                preferred_element_type=f32) + t
    h = jnp.maximum(h, 0.0)
    for wk, bk in (("w2", "b2"), ("w3", "b3"), ("w4", "b4")):
        h = jnp.maximum(
            jnp.dot(h.astype(bf16), params[wk].astype(bf16),
                    preferred_element_type=f32) + params[bk], 0.0)
    return jnp.dot(h.astype(bf16), params["w5"].astype(bf16),
                   preferred_element_type=f32) + params["b5"]


if __name__ == "__main__":
    key = jax.random.PRNGKey(0)
    k_param, k_state, k_act, k_state2, k_act2 = jax.random.split(key, 5)

    state_latent_features = 32
    num_actions = 6          # action_converter.shape[0], discrete

    params = init_params(k_param, num_actions, state_latent_features, discrete=True)
    prepared = prepare_params(params, state_latent_features, discrete=True)

    # --- Small single-block case (grid = 1) --------------------------------- #
    batch = 8
    state_latent = jax.random.normal(k_state, (batch, state_latent_features), jnp.float32)
    action = jax.random.randint(k_act, (batch,), 0, num_actions, jnp.int32)

    out = jax.block_until_ready(
        mlp_reconstruct_forward(prepared, state_latent, action, discrete=True))
    assert out.shape == (batch, state_latent_features)
    out_f = out.astype(jnp.float32)

    ref_matched = _reference_forward_matched(params, state_latent, action, discrete=True)
    assert jnp.allclose(out_f, ref_matched, atol=1e-2, rtol=1e-2), "mismatch vs matched ref"

    ref_f32 = _reference_forward_f32(params, state_latent, action, discrete=True)
    assert jnp.allclose(out_f, ref_f32, atol=5e-2, rtol=5e-2), "mismatch vs f32 ref"

    # --- Multi-block case (2 grid steps + fractional-block padding path) ---- #
    batch2 = 260
    state2 = jax.random.normal(k_state2, (batch2, state_latent_features), jnp.float32)
    action2 = jax.random.randint(k_act2, (batch2,), 0, num_actions, jnp.int32)
    out2 = jax.block_until_ready(
        mlp_reconstruct_forward(prepared, state2, action2, discrete=True))
    assert out2.shape == (batch2, state_latent_features)
    ref_matched2 = _reference_forward_matched(params, state2, action2, discrete=True)
    assert jnp.allclose(out2.astype(jnp.float32), ref_matched2,
                        atol=1e-2, rtol=1e-2), "mismatch vs matched ref (multi-block)"

    print("KERNEL_OK")
</pallas_src>

<mosaic_0001>
module attributes {stable_mosaic.version = 11 : i64} {
  func.func @_mlp_kernel_discrete(%arg0: i32, %arg1: memref<8x1xi32, #tpu.memory_space<vmem>>, %arg2: memref<8x32xbf16, #tpu.memory_space<vmem>>, %arg3: memref<8x128xf32, #tpu.memory_space<vmem>>, %arg4: memref<32x128xbf16, #tpu.memory_space<vmem>>, %arg5: memref<128x128xbf16, #tpu.memory_space<vmem>>, %arg6: memref<1x128xf32, #tpu.memory_space<vmem>>, %arg7: memref<128x128xbf16, #tpu.memory_space<vmem>>, %arg8: memref<1x128xf32, #tpu.memory_space<vmem>>, %arg9: memref<128x128xbf16, #tpu.memory_space<vmem>>, %arg10: memref<1x128xf32, #tpu.memory_space<vmem>>, %arg11: memref<128x128xbf16, #tpu.memory_space<vmem>>, %arg12: memref<1x128xf32, #tpu.memory_space<vmem>>, %arg13: memref<8x128xbf16, #tpu.memory_space<vmem>>) attributes {dimension_semantics = [#tpu.dimension_semantics<parallel>], iteration_bounds = array<i64: 1>, scalar_prefetch = 0 : i64, scratch_operands = 0 : i64, tpu.core_type = #tpu.core_type<tc>, window_params = [{transform_indices = @transform_0, window_bounds = array<i64: 8, 1>}, {transform_indices = @transform_1, window_bounds = array<i64: 8, 32>}, {pipeline_mode = #tpu.pipeline_mode<synchronous>, transform_indices = @transform_2, window_bounds = array<i64: 8, 128>}, {pipeline_mode = #tpu.pipeline_mode<synchronous>, transform_indices = @transform_3, window_bounds = array<i64: 32, 128>}, {pipeline_mode = #tpu.pipeline_mode<synchronous>, transform_indices = @transform_4, window_bounds = array<i64: 128, 128>}, {pipeline_mode = #tpu.pipeline_mode<synchronous>, transform_indices = @transform_5, window_bounds = array<i64: 1, 128>}, {pipeline_mode = #tpu.pipeline_mode<synchronous>, transform_indices = @transform_6, window_bounds = array<i64: 128, 128>}, {pipeline_mode = #tpu.pipeline_mode<synchronous>, transform_indices = @transform_7, window_bounds = array<i64: 1, 128>}, {pipeline_mode = #tpu.pipeline_mode<synchronous>, transform_indices = @transform_8, window_bounds = array<i64: 128, 128>}, {pipeline_mode = #tpu.pipeline_mode<synchronous>, transform_indices = @transform_9, window_bounds = array<i64: 1, 128>}, {pipeline_mode = #tpu.pipeline_mode<synchronous>, transform_indices = @transform_10, window_bounds = array<i64: 128, 128>}, {pipeline_mode = #tpu.pipeline_mode<synchronous>, transform_indices = @transform_11, window_bounds = array<i64: 1, 128>}, {transform_indices = @transform_12, window_bounds = array<i64: 8, 128>}]} {
    %0 = tpu.iota {dimensions = array<i32: 1>} : vector<8x8xi32>
    %c0 = arith.constant 0 : index
    %c0_0 = arith.constant 0 : index
    %1 = vector.load %arg1[%c0, %c0_0] : memref<8x1xi32, #tpu.memory_space<vmem>>, vector<8x1xi32>
    %2 = vector.broadcast %1 : vector<8x1xi32> to vector<8x8xi32>
    %3 = arith.cmpi eq, %0, %2 : vector<8x8xi32>
    %4 = arith.extui %3 : vector<8x8xi1> to vector<8x8xi32>
    %5 = arith.sitofp %4 : vector<8x8xi32> to vector<8x8xf32>
    %c0_1 = arith.constant 0 : index
    %c0_2 = arith.constant 0 : index
    %6 = vector.load %arg3[%c0_1, %c0_2] : memref<8x128xf32, #tpu.memory_space<vmem>>, vector<8x128xf32>
    %cst = arith.constant dense<0.000000e+00> : vector<8x128xf32>
    %7 = tpu.matmul %5, %6, %cst {dimension_numbers = #tpu.dot_dimension_numbers<[1], [0], [0], [1], [0, 0, 1, 1], [], []>} : vector<8x8xf32>, vector<8x128xf32>, vector<8x128xf32> -> vector<8x128xf32>
    %c0_3 = arith.constant 0 : index
    %c0_4 = arith.constant 0 : index
    %8 = vector.load %arg2[%c0_3, %c0_4] : memref<8x32xbf16, #tpu.memory_space<vmem>>, vector<8x32xbf16>
    %c0_5 = arith.constant 0 : index
    %c0_6 = arith.constant 0 : index
    %9 = vector.load %arg4[%c0_5, %c0_6] : memref<32x128xbf16, #tpu.memory_space<vmem>>, vector<32x128xbf16>
    %cst_7 = arith.constant dense<0.000000e+00> : vector<8x128xf32>
    %10 = tpu.matmul %8, %9, %cst_7 {dimension_numbers = #tpu.dot_dimension_numbers<[1], [0], [0], [1], [0, 0, 1, 1], [], []>} : vector<8x32xbf16>, vector<32x128xbf16>, vector<8x128xf32> -> vector<8x128xf32>
    %11 = arith.addf %10, %7 : vector<8x128xf32>
    %cst_8 = arith.constant 0.000000e+00 : f32
    %12 = vector.broadcast %cst_8 : f32 to vector<8x128xf32>
    %13 = arith.maximumf %11, %12 : vector<8x128xf32>
    %14 = arith.truncf %13 : vector<8x128xf32> to vector<8x128xbf16>
    %c0_9 = arith.constant 0 : index
    %c0_10 = arith.constant 0 : index
    %15 = vector.load %arg5[%c0_9, %c0_10] : memref<128x128xbf16, #tpu.memory_space<vmem>>, vector<128x128xbf16>
    %cst_11 = arith.constant dense<0.000000e+00> : vector<8x128xf32>
    %16 = tpu.matmul %14, %15, %cst_11 {dimension_numbers = #tpu.dot_dimension_numbers<[1], [0], [0], [1], [0, 0, 1, 1], [], []>} : vector<8x128xbf16>, vector<128x128xbf16>, vector<8x128xf32> -> vector<8x128xf32>
    %c0_12 = arith.constant 0 : index
    %c0_13 = arith.constant 0 : index
    %17 = vector.load %arg6[%c0_12, %c0_13] : memref<1x128xf32, #tpu.memory_space<vmem>>, vector<1x128xf32>
    %18 = vector.broadcast %17 : vector<1x128xf32> to vector<8x128xf32>
    %19 = arith.addf %16, %18 : vector<8x128xf32>
    %cst_14 = arith.constant 0.000000e+00 : f32
    %20 = vector.broadcast %cst_14 : f32 to vector<8x128xf32>
    %21 = arith.maximumf %19, %20 : vector<8x128xf32>
    %22 = arith.truncf %21 : vector<8x128xf32> to vector<8x128xbf16>
    %c0_15 = arith.constant 0 : index
    %c0_16 = arith.constant 0 : index
    %23 = vector.load %arg7[%c0_15, %c0_16] : memref<128x128xbf16, #tpu.memory_space<vmem>>, vector<128x128xbf16>
    %cst_17 = arith.constant dense<0.000000e+00> : vector<8x128xf32>
    %24 = tpu.matmul %22, %23, %cst_17 {dimension_numbers = #tpu.dot_dimension_numbers<[1], [0], [0], [1], [0, 0, 1, 1], [], []>} : vector<8x128xbf16>, vector<128x128xbf16>, vector<8x128xf32> -> vector<8x128xf32>
    %c0_18 = arith.constant 0 : index
    %c0_19 = arith.constant 0 : index
    %25 = vector.load %arg8[%c0_18, %c0_19] : memref<1x128xf32, #tpu.memory_space<vmem>>, vector<1x128xf32>
    %26 = vector.broadcast %25 : vector<1x128xf32> to vector<8x128xf32>
    %27 = arith.addf %24, %26 : vector<8x128xf32>
    %cst_20 = arith.constant 0.000000e+00 : f32
    %28 = vector.broadcast %cst_20 : f32 to vector<8x128xf32>
    %29 = arith.maximumf %27, %28 : vector<8x128xf32>
    %30 = arith.truncf %29 : vector<8x128xf32> to vector<8x128xbf16>
    %c0_21 = arith.constant 0 : index
    %c0_22 = arith.constant 0 : index
    %31 = vector.load %arg9[%c0_21, %c0_22] : memref<128x128xbf16, #tpu.memory_space<vmem>>, vector<128x128xbf16>
    %cst_23 = arith.constant dense<0.000000e+00> : vector<8x128xf32>
    %32 = tpu.matmul %30, %31, %cst_23 {dimension_numbers = #tpu.dot_dimension_numbers<[1], [0], [0], [1], [0, 0, 1, 1], [], []>} : vector<8x128xbf16>, vector<128x128xbf16>, vector<8x128xf32> -> vector<8x128xf32>
    %c0_24 = arith.constant 0 : index
    %c0_25 = arith.constant 0 : index
    %33 = vector.load %arg10[%c0_24, %c0_25] : memref<1x128xf32, #tpu.memory_space<vmem>>, vector<1x128xf32>
    %34 = vector.broadcast %33 : vector<1x128xf32> to vector<8x128xf32>
    %35 = arith.addf %32, %34 : vector<8x128xf32>
    %cst_26 = arith.constant 0.000000e+00 : f32
    %36 = vector.broadcast %cst_26 : f32 to vector<8x128xf32>
    %37 = arith.maximumf %35, %36 : vector<8x128xf32>
    %38 = arith.truncf %37 : vector<8x128xf32> to vector<8x128xbf16>
    %c0_27 = arith.constant 0 : index
    %c0_28 = arith.constant 0 : index
    %39 = vector.load %arg11[%c0_27, %c0_28] : memref<128x128xbf16, #tpu.memory_space<vmem>>, vector<128x128xbf16>
    %cst_29 = arith.constant dense<0.000000e+00> : vector<8x128xf32>
    %40 = tpu.matmul %38, %39, %cst_29 {dimension_numbers = #tpu.dot_dimension_numbers<[1], [0], [0], [1], [0, 0, 1, 1], [], []>} : vector<8x128xbf16>, vector<128x128xbf16>, vector<8x128xf32> -> vector<8x128xf32>
    %c0_30 = arith.constant 0 : index
    %c0_31 = arith.constant 0 : index
    %41 = vector.load %arg12[%c0_30, %c0_31] : memref<1x128xf32, #tpu.memory_space<vmem>>, vector<1x128xf32>
    %42 = vector.broadcast %41 : vector<1x128xf32> to vector<8x128xf32>
    %43 = arith.addf %40, %42 : vector<8x128xf32>
    %44 = arith.truncf %43 : vector<8x128xf32> to vector<8x128xbf16>
    %c0_32 = arith.constant 0 : index
    %c0_33 = arith.constant 0 : index
    %45 = vector.load %arg13[%c0_32, %c0_33] : memref<8x128xbf16, #tpu.memory_space<vmem>>, vector<8x128xbf16>
    tpu.vector_store %arg13[%c0_32, %c0_33], %44 {strides = array<i32>} : memref<8x128xbf16, #tpu.memory_space<vmem>>, vector<8x128xbf16>,
    return
  }
  func.func @transform_0(%arg0: i32) -> (i32, i32) {
    %c0_i32 = arith.constant 0 : i32
    %c0_i32_0 = arith.constant 0 : i32
    return %arg0, %c0_i32 : i32, i32
  }
  func.func @transform_1(%arg0: i32) -> (i32, i32) {
    %c0_i32 = arith.constant 0 : i32
    %c0_i32_0 = arith.constant 0 : i32
    return %arg0, %c0_i32 : i32, i32
  }
  func.func @transform_2(%arg0: i32) -> (i32, i32) {
    %c0_i32 = arith.constant 0 : i32
    %c0_i32_0 = arith.constant 0 : i32
    %c0_i32_1 = arith.constant 0 : i32
    return %c0_i32, %c0_i32_0 : i32, i32
  }
  func.func @transform_3(%arg0: i32) -> (i32, i32) {
    %c0_i32 = arith.constant 0 : i32
    %c0_i32_0 = arith.constant 0 : i32
    %c0_i32_1 = arith.constant 0 : i32
    return %c0_i32, %c0_i32_0 : i32, i32
  }
  func.func @transform_4(%arg0: i32) -> (i32, i32) {
    %c0_i32 = arith.constant 0 : i32
    %c0_i32_0 = arith.constant 0 : i32
    %c0_i32_1 = arith.constant 0 : i32
    return %c0_i32, %c0_i32_0 : i32, i32
  }
  func.func @transform_5(%arg0: i32) -> (i32, i32) {
    %c0_i32 = arith.constant 0 : i32
    %c0_i32_0 = arith.constant 0 : i32
    %c0_i32_1 = arith.constant 0 : i32
    return %c0_i32, %c0_i32_0 : i32, i32
  }
  func.func @transform_6(%arg0: i32) -> (i32, i32) {
    %c0_i32 = arith.constant 0 : i32
    %c0_i32_0 = arith.constant 0 : i32
    %c0_i32_1 = arith.constant 0 : i32
    return %c0_i32, %c0_i32_0 : i32, i32
  }
  func.func @transform_7(%arg0: i32) -> (i32, i32) {
    %c0_i32 = arith.constant 0 : i32
    %c0_i32_0 = arith.constant 0 : i32
    %c0_i32_1 = arith.constant 0 : i32
    return %c0_i32, %c0_i32_0 : i32, i32
  }
  func.func @transform_8(%arg0: i32) -> (i32, i32) {
    %c0_i32 = arith.constant 0 : i32
    %c0_i32_0 = arith.constant 0 : i32
    %c0_i32_1 = arith.constant 0 : i32
    return %c0_i32, %c0_i32_0 : i32, i32
  }
  func.func @transform_9(%arg0: i32) -> (i32, i32) {
    %c0_i32 = arith.constant 0 : i32
    %c0_i32_0 = arith.constant 0 : i32
    %c0_i32_1 = arith.constant 0 : i32
    return %c0_i32, %c0_i32_0 : i32, i32
  }
  func.func @transform_10(%arg0: i32) -> (i32, i32) {
    %c0_i32 = arith.constant 0 : i32
    %c0_i32_0 = arith.constant 0 : i32
    %c0_i32_1 = arith.constant 0 : i32
    return %c0_i32, %c0_i32_0 : i32, i32
  }
  func.func @transform_11(%arg0: i32) -> (i32, i32) {
    %c0_i32 = arith.constant 0 : i32
    %c0_i32_0 = arith.constant 0 : i32
    %c0_i32_1 = arith.constant 0 : i32
    return %c0_i32, %c0_i32_0 : i32, i32
  }
  func.func @transform_12(%arg0: i32) -> (i32, i32) {
    %c0_i32 = arith.constant 0 : i32
    %c0_i32_0 = arith.constant 0 : i32
    return %arg0, %c0_i32 : i32, i32
  }
}

</mosaic_0001>

<llo_original>
// kernel: mlp_reconstruct_forward.1
$region0: #{mlp_reconstruct_forward.1}
  #allocation0 [shape = 'u32[]', space=smem, size = 0x4, offset = 0x4, fixed_abs, tag = 'smem constant byte address 0x4 - core index']
  #allocation1 [shape = 'u32[144,128]{1,0:T(1,128)}', space=vmem, size = 0x12000, scoped, tag = 'internal scratch']
  %s0 = inlined_call_operand.vmem [shape: s32[8,1], index: 0, kind: input, shape index: {}]
  %s1 = inlined_call_operand.vmem [shape: bf16[8,32], index: 1, kind: input, shape index: {}]
  %s2 = inlined_call_operand.vmem [shape: f32[8,128], index: 2, kind: input, shape index: {}]
  %s3 = inlined_call_operand.vmem [shape: bf16[32,128], index: 3, kind: input, shape index: {}]
  %s4 = inlined_call_operand.hbm [shape: bf16[128,128], index: 4, kind: input, shape index: {}]
  %s5 = inlined_call_operand.vmem [shape: f32[1,128], index: 5, kind: input, shape index: {}]
  %s6 = inlined_call_operand.hbm [shape: bf16[128,128], index: 6, kind: input, shape index: {}]
  %s7 = inlined_call_operand.vmem [shape: f32[1,128], index: 7, kind: input, shape index: {}]
  %s8 = inlined_call_operand.hbm [shape: bf16[128,128], index: 8, kind: input, shape index: {}]
  %s9 = inlined_call_operand.vmem [shape: f32[1,128], index: 9, kind: input, shape index: {}]
  %s10 = inlined_call_operand.hbm [shape: bf16[128,128], index: 10, kind: input, shape index: {}]
  %s11 = inlined_call_operand.vmem [shape: f32[1,128], index: 11, kind: input, shape index: {}]
  %s12 = inlined_call_operand.hbm [shape: bf16[8,128], index: 12, kind: output, shape index: {}]
  %s13 = sld [smem:[#allocation0]]
  $region74: #{mlp_reconstruct_forward.1} parent=0
    _
  %s15 = ssub.s32 1, %s13
  %s16 = scalar_select 0, %s15, %s13
  $region1: #{mlp_reconstruct_forward.1} parent=0
    #allocation2 [shape = 'u8[32768]{0}', space=vmem, size = 0x8000, scoped, tag = 'input window, operand 4, single buffered']
    #allocation3 [shape = 's32[1]{0}', space=sflag, size = 0x4, scoped, tag = 'scoped memory for mlp_reconstruct_forward.1']
    #allocation4 [shape = 's32[1]{0}', space=sflag, size = 0x4, scoped, tag = 'scoped memory for mlp_reconstruct_forward.1']
    #allocation5 [shape = 'u8[32768]{0}', space=vmem, size = 0x8000, scoped, tag = 'input window, operand 6, single buffered']
    #allocation6 [shape = 's32[1]{0}', space=sflag, size = 0x4, scoped, tag = 'scoped memory for mlp_reconstruct_forward.1']
    #allocation7 [shape = 'u8[32768]{0}', space=vmem, size = 0x8000, scoped, tag = 'input window, operand 8, single buffered']
    #allocation8 [shape = 'u8[32768]{0}', space=vmem, size = 0x8000, scoped, tag = 'input window, operand 10, single buffered']
    #allocation9 [shape = 's32[1]{0}', space=sflag, size = 0x4, scoped, tag = 'scoped memory for mlp_reconstruct_forward.1']
    #allocation10 [shape = 'u8[2048]{0}', space=vmem, size = 0x800, scoped, tag = 'output window, operand 0, single buffered']
    %17 = vsyncpa [#allocation3], 0
    %18 = vsyncpa [#allocation6], 0
    %19 = vsyncpa [#allocation9], 0
    %20 = vsyncpa [#allocation4], 0
    // Predicated region
    $region2: #{mlp_reconstruct_forward.1} parent=1 // pred_check
      _
    $region3: #{mlp_reconstruct_forward.1} parent=1 // pred_check_branch
      %22 = sbr.rel (0) target = $region5
    $region4: #{mlp_reconstruct_forward.1} parent=1 // pred_region
      _
    $region5: #{mlp_reconstruct_forward.1} parent=1 // pred_fallthru
      _
    // Predicated region
    $region6: #{mlp_reconstruct_forward.1} parent=1 // pred_check
      _
    $region7: #{mlp_reconstruct_forward.1} parent=1 // pred_check_branch
      %24 = sbr.rel (0) target = $region9
    $region8: #{mlp_reconstruct_forward.1} parent=1 // pred_region
      _
    $region9: #{mlp_reconstruct_forward.1} parent=1 // pred_fallthru
      _
    // Predicated region
    $region10: #{mlp_reconstruct_forward.1} parent=1 // pred_check
      _
    $region11: #{mlp_reconstruct_forward.1} parent=1 // pred_check_branch
      %26 = sbr.rel (0) target = $region13
    $region12: #{mlp_reconstruct_forward.1} parent=1 // pred_region
      _
    $region13: #{mlp_reconstruct_forward.1} parent=1 // pred_fallthru
      _
    // Predicated region
    $region14: #{mlp_reconstruct_forward.1} parent=1 // pred_check
      _
    $region15: #{mlp_reconstruct_forward.1} parent=1 // pred_check_branch
      %28 = sbr.rel (0) target = $region17
    $region16: #{mlp_reconstruct_forward.1} parent=1 // pred_region
      _
    $region17: #{mlp_reconstruct_forward.1} parent=1 // pred_fallthru
      _
    // Predicated region
    $region18: #{mlp_reconstruct_forward.1} parent=1 // pred_check
      _
    $region19: #{mlp_reconstruct_forward.1} parent=1 // pred_check_branch
      %30 = sbr.rel (0) target = $region21
    $region20: #{mlp_reconstruct_forward.1} parent=1 // pred_region
      %s32 = ssub.s32 1024, 1024
      %33 = vsyncadd [#allocation3], %s32
      %s34 = sshll.u32 [#allocation2], 4
      %s35 = int_to_ptr.vmem [resolvable:$true] %s34
      %40 = dma.hbm_to_vmem [thread:$0]  %s4, 1024, %s35, [#allocation3], 64, 64, 4
    $region21: #{mlp_reconstruct_forward.1} parent=1 // pred_fallthru
      _
    // Predicated region
    $region22: #{mlp_reconstruct_forward.1} parent=1 // pred_check
      _
    $region23: #{mlp_reconstruct_forward.1} parent=1 // pred_check_branch
      %42 = sbr.rel (0) target = $region25
    $region24: #{mlp_reconstruct_forward.1} parent=1 // pred_region
      _
    $region25: #{mlp_reconstruct_forward.1} parent=1 // pred_fallthru
      _
    // Predicated region
    $region26: #{mlp_reconstruct_forward.1} parent=1 // pred_check
      _
    $region27: #{mlp_reconstruct_forward.1} parent=1 // pred_check_branch
      %44 = sbr.rel (0) target = $region29
    $region28: #{mlp_reconstruct_forward.1} parent=1 // pred_region
      %s46 = ssub.s32 1024, 1024
      %47 = vsyncadd [#allocation6], %s46
      %s48 = sshll.u32 [#allocation5], 4
      %s49 = int_to_ptr.vmem [resolvable:$true] %s48
      %54 = dma.hbm_to_vmem [thread:$0]  %s6, 1024, %s49, [#allocation6], 64, 64, 4
    $region29: #{mlp_reconstruct_forward.1} parent=1 // pred_fallthru
      _
    // Predicated region
    $region30: #{mlp_reconstruct_forward.1} parent=1 // pred_check
      _
    $region31: #{mlp_reconstruct_forward.1} parent=1 // pred_check_branch
      %56 = sbr.rel (0) target = $region33
    $region32: #{mlp_reconstruct_forward.1} parent=1 // pred_region
      _
    $region33: #{mlp_reconstruct_forward.1} parent=1 // pred_fallthru
      _
    // Predicated region
    $region34: #{mlp_reconstruct_forward.1} parent=1 // pred_check
      _
    $region35: #{mlp_reconstruct_forward.1} parent=1 // pred_check_branch
      %58 = sbr.rel (0) target = $region37
    $region36: #{mlp_reconstruct_forward.1} parent=1 // pred_region
      %s60 = ssub.s32 1024, 1024
      %61 = vsyncadd [#allocation6], %s60
      %s62 = sshll.u32 [#allocation7], 4
      %s63 = int_to_ptr.vmem [resolvable:$true] %s62
      %68 = dma.hbm_to_vmem [thread:$0]  %s8, 1024, %s63, [#allocation6], 64, 64, 4
    $region37: #{mlp_reconstruct_forward.1} parent=1 // pred_fallthru
      _
    // Predicated region
    $region38: #{mlp_reconstruct_forward.1} parent=1 // pred_check
      _
    $region39: #{mlp_reconstruct_forward.1} parent=1 // pred_check_branch
      %70 = sbr.rel (0) target = $region41
    $region40: #{mlp_reconstruct_forward.1} parent=1 // pred_region
      _
    $region41: #{mlp_reconstruct_forward.1} parent=1 // pred_fallthru
      _
    // Predicated region
    $region42: #{mlp_reconstruct_forward.1} parent=1 // pred_check
      _
    $region43: #{mlp_reconstruct_forward.1} parent=1 // pred_check_branch
      %72 = sbr.rel (0) target = $region45
    $region44: #{mlp_reconstruct_forward.1} parent=1 // pred_region
      %s74 = ssub.s32 1024, 1024
      %75 = vsyncadd [#allocation9], %s74
      %s76 = sshll.u32 [#allocation8], 4
      %s77 = int_to_ptr.vmem [resolvable:$true] %s76
      %82 = dma.hbm_to_vmem [thread:$0]  %s10, 1024, %s77, [#allocation9], 64, 64, 4
    $region45: #{mlp_reconstruct_forward.1} parent=1 // pred_fallthru
      _
    // Predicated region
    $region46: #{mlp_reconstruct_forward.1} parent=1 // pred_check
      _
    $region47: #{mlp_reconstruct_forward.1} parent=1 // pred_check_branch
      %84 = sbr.rel (0) target = $region49
    $region48: #{mlp_reconstruct_forward.1} parent=1 // pred_region
      _
    $region49: #{mlp_reconstruct_forward.1} parent=1 // pred_fallthru
      _
    // Predicated region
    $region50: #{mlp_reconstruct_forward.1} parent=1 // pred_check
      _
    $region51: #{mlp_reconstruct_forward.1} parent=1 // pred_check_branch
      %86 = sbr.rel (0) target = $region53
    $region52: #{mlp_reconstruct_forward.1} parent=1 // pred_region
      %87 = dma.done [#allocation3], 1024
    $region53: #{mlp_reconstruct_forward.1} parent=1 // pred_fallthru
      _
    // Predicated region
    $region54: #{mlp_reconstruct_forward.1} parent=1 // pred_check
      _
    $region55: #{mlp_reconstruct_forward.1} parent=1 // pred_check_branch
      %89 = sbr.rel (0) target = $region57
    $region56: #{mlp_reconstruct_forward.1} parent=1 // pred_region
      %90 = dma.done [#allocation6], 1024
    $region57: #{mlp_reconstruct_forward.1} parent=1 // pred_fallthru
      _
    // Predicated region
    $region58: #{mlp_reconstruct_forward.1} parent=1 // pred_check
      _
    $region59: #{mlp_reconstruct_forward.1} parent=1 // pred_check_branch
      %92 = sbr.rel (0) target = $region61
    $region60: #{mlp_reconstruct_forward.1} parent=1 // pred_region
      %93 = dma.done [#allocation6], 1024
    $region61: #{mlp_reconstruct_forward.1} parent=1 // pred_fallthru
      _
    // Predicated region
    $region62: #{mlp_reconstruct_forward.1} parent=1 // pred_check
      _
    $region63: #{mlp_reconstruct_forward.1} parent=1 // pred_check_branch
      %95 = sbr.rel (0) target = $region65
    $region64: #{mlp_reconstruct_forward.1} parent=1 // pred_region
      %96 = dma.done [#allocation9], 1024
    $region65: #{mlp_reconstruct_forward.1} parent=1 // pred_fallthru
      _
    %v98 = vlaneseq
    %v99 = vand.u32 %v98, 127
    %v100 = vld [vmem:[%s0] sm:$0xff]
    %101 = vset.pattern.permute.xlu0 0
    %102 = vperm.xlu0 %101, %v100
    %v103 = vpop.permute.xlu0 %102
    %vm104 = vcmp.eq.s32.totalorder %v99, %v103
    %v105 = vsel %vm104, 1, 0
    %v106 = vcvt.s32.f32 %v105
    %v107 = vld [vmem:[%s2] sm:$0xff]
    %vm108 = vcmask 64512
    %v110 = vsel %vm108, %v106, 0
    %112 = vmatprep.subr.mxu0 0.0
    %113 = vmatpush1.msra.mxu0 %v107
    %114 = vmatprep.subr.mxu0 0.0
    %115 = vmatpush1.msra.mxu0 0.0
    %116 = vmatprep.subr.mxu0 0.0
    %117 = vmatpush1.msra.mxu0 0.0
    %118 = vmatprep.subr.mxu0 0.0
    %119 = vmatpush1.msra.mxu0 0.0
    %120 = vmatprep.subr.mxu0 0.0
    %121 = vmatpush1.msra.mxu0 0.0
    %122 = vmatprep.subr.mxu0 0.0
    %123 = vmatpush1.msra.mxu0 0.0
    %124 = vmatprep.subr.mxu0 0.0
    %125 = vmatpush1.msra.mxu0 0.0
    %126 = vmatprep.subr.mxu0 0.0
    %127 = vmatpush1.msra.mxu0 0.0
    %128 = vmatprep.subr.mxu0 0.0
    %129 = vmatpush1.msra.mxu0 0.0
    %130 = vmatprep.subr.mxu0 0.0
    %131 = vmatpush1.msra.mxu0 0.0
    %132 = vmatprep.subr.mxu0 0.0
    %133 = vmatpush1.msra.mxu0 0.0
    %134 = vmatprep.subr.mxu0 0.0
    %135 = vmatpush1.msra.mxu0 0.0
    %136 = vmatprep.subr.mxu0 0.0
    %137 = vmatpush1.msra.mxu0 0.0
    %138 = vmatprep.subr.mxu0 0.0
    %139 = vmatpush1.msra.mxu0 0.0
    %140 = vmatprep.subr.mxu0 0.0
    %141 = vmatpush1.msra.mxu0 0.0
    %142 = vmatprep.subr.mxu0 0.0
    %143 = vmatpush1.msra.mxu0 0.0
    %144 = vmatprep.subr.mxu0 0.0
    %145 = vmatpush1.msra.mxu0 0.0
    %146 = vmatprep.subr.mxu0 0.0
    %147 = vmatpush1.msra.mxu0 0.0
    %148 = vmatprep.subr.mxu0 0.0
    %149 = vmatpush1.msra.mxu0 0.0
    %150 = vmatprep.subr.mxu0 0.0
    %151 = vmatpush1.msra.mxu0 0.0
    %152 = vmatprep.subr.mxu0 0.0
    %153 = vmatpush1.msra.mxu0 0.0
    %154 = vmatprep.subr.mxu0 0.0
    %155 = vmatpush1.msra.mxu0 0.0
    %156 = vmatprep.subr.mxu0 0.0
    %157 = vmatpush1.msra.mxu0 0.0
    %158 = vmatprep.subr.mxu0 0.0
    %159 = vmatpush1.msra.mxu0 0.0
    %160 = vmatprep.subr.mxu0 0.0
    %161 = vmatpush1.msra.mxu0 0.0
    %162 = vmatprep.subr.mxu0 0.0
    %163 = vmatpush1.msra.mxu0 0.0
    %164 = vmatprep.subr.mxu0 0.0
    %165 = vmatpush1.msra.mxu0 0.0
    %166 = vmatprep.subr.mxu0 0.0
    %167 = vmatpush1.msra.mxu0 0.0
    %168 = vmatprep.subr.mxu0 0.0
    %169 = vmatpush1.msra.mxu0 0.0
    %170 = vmatprep.subr.mxu0 0.0
    %171 = vmatpush1.msra.mxu0 0.0
    %172 = vmatprep.subr.mxu0 0.0
    %173 = vmatpush1.msra.mxu0 0.0
    %174 = vmatprep.subr.mxu0 0.0
    %175 = vmatpush1.msra.mxu0 0.0
    %176 = vmatprep.mubr.f32.mxu0 0.0
    %177 = vmatmul.mubr.f32.gmra.mrb[0].mxu0 %v110
    %v178 = vpop.f32.mrb[0].mxu0
    %v179 = vadd.f32 0.0, %v178
    %v180 = vpop.f32.mrb[0].mxu0
    %181 = vdwg.mxu0
    %v182 = vld [vmem:[%s1] sm:$0xf]
    %v183 = vld [vmem:[%s3] sm:$0xf]
    %v184 = vld [vmem:[%s3 + $0x4] sm:$0xf]
    %v185 = vld [vmem:[%s3 + $0x8] sm:$0xf]
    %v186 = vld [vmem:[%s3 + $0xc] sm:$0xf]
    %v191 = vunpack.c.l.b16 %v183
    %v192 = vunpack.c.l.b16 %v184
    %v193 = vunpack.c.l.b16 %v185
    %v194 = vunpack.c.l.b16 %v186
    %v195 = vpack.c.b16 %v192, %v191
    %v196 = vpack.c.b16 %v194, %v193
    %vm199 = vcmask 261120
    %v201 = vsel %vm199, %v182, 0
    %203 = vmatprep.subr.bf16.mxu0 0
    %204 = vmatpush1.bf16.msra.mxu0 %v195
    %205 = vmatprep.subr.bf16.mxu0 0
    %206 = vmatpush1.bf16.msra.mxu0 %v196
    %207 = vmatprep.subr.bf16.mxu0 0
    %208 = vmatpush1.bf16.msra.mxu0 0
    %209 = vmatprep.subr.bf16.mxu0 0
    %210 = vmatpush1.bf16.msra.mxu0 0
    %211 = vmatprep.subr.bf16.mxu0 0
    %212 = vmatpush1.bf16.msra.mxu0 0
    %213 = vmatprep.subr.bf16.mxu0 0
    %214 = vmatpush1.bf16.msra.mxu0 0
    %215 = vmatprep.subr.bf16.mxu0 0
    %216 = vmatpush1.bf16.msra.mxu0 0
    %217 = vmatprep.subr.bf16.mxu0 0
    %218 = vmatpush1.bf16.msra.mxu0 0
    %219 = vmatprep.subr.bf16.mxu0 0
    %220 = vmatpush1.bf16.msra.mxu0 0
    %221 = vmatprep.subr.bf16.mxu0 0
    %222 = vmatpush1.bf16.msra.mxu0 0
    %223 = vmatprep.subr.bf16.mxu0 0
    %224 = vmatpush1.bf16.msra.mxu0 0
    %225 = vmatprep.subr.bf16.mxu0 0
    %226 = vmatpush1.bf16.msra.mxu0 0
    %227 = vmatprep.subr.bf16.mxu0 0
    %228 = vmatpush1.bf16.msra.mxu0 0
    %229 = vmatprep.subr.bf16.mxu0 0
    %230 = vmatpush1.bf16.msra.mxu0 0
    %231 = vmatprep.subr.bf16.mxu0 0
    %232 = vmatpush1.bf16.msra.mxu0 0
    %233 = vmatprep.subr.bf16.mxu0 0
    %234 = vmatpush1.bf16.msra.mxu0 0
    %235 = vmatprep.mubr.bf16.mxu0 0
    %236 = vmatmul.mubr.bf16.gmra.mrb[0].mxu0 %v201
    %v237 = vpop.f32.mrb[0].mxu0
    %v238 = vadd.f32 %v179, %v237
    %v239 = vpop.f32.mrb[0].mxu0
    %v240 = vpop.f32.mrb[0].mxu0
    %v241 = vpop.f32.mrb[0].mxu0
    %242 = vdwg.mxu0
    %v243 = vmax.f32 %v238, 0.0
    %v244 = vpack.c.bf16 %v243, %v243
    %v245 = vld [vmem:[#allocation2] sm:$0xf]
    %v246 = vld [vmem:[#allocation2 + $0x4] sm:$0xf]
    %v247 = vld [vmem:[#allocation2 + $0x8] sm:$0xf]
    %v248 = vld [vmem:[#allocation2 + $0xc] sm:$0xf]
    %v249 = vld [vmem:[#allocation2 + $0x10] sm:$0xf]
    %v250 = vld [vmem:[#allocation2 + $0x14] sm:$0xf]
    %v251 = vld [vmem:[#allocation2 + $0x18] sm:$0xf]
    %v252 = vld [vmem:[#allocation2 + $0x1c] sm:$0xf]
    %v253 = vld [vmem:[#allocation2 + $0x20] sm:$0xf]
    %v254 = vld [vmem:[#allocation2 + $0x24] sm:$0xf]
    %v255 = vld [vmem:[#allocation2 + $0x28] sm:$0xf]
    %v256 = vld [vmem:[#allocation2 + $0x2c] sm:$0xf]
    %v257 = vld [vmem:[#allocation2 + $0x30] sm:$0xf]
    %v258 = vld [vmem:[#allocation2 + $0x34] sm:$0xf]
    %v259 = vld [vmem:[#allocation2 + $0x38] sm:$0xf]
    %v260 = vld [vmem:[#allocation2 + $0x3c] sm:$0xf]
    %v261 = vld [vmem:[%s5] sm:$0x1]
    %v263 = vlaneseq
    %v264 = vshrl.u32 %v263, 7
    %v265 = vsub.s32 0, %v264
    %v266 = vrot.slane %v261, %v265
    %v284 = vunpack.c.l.b16 %v245
    %v285 = vunpack.c.l.b16 %v246
    %v286 = vunpack.c.l.b16 %v247
    %v287 = vunpack.c.l.b16 %v248
    %v288 = vunpack.c.l.b16 %v249
    %v289 = vunpack.c.l.b16 %v250
    %v290 = vunpack.c.l.b16 %v251
    %v291 = vunpack.c.l.b16 %v252
    %v292 = vunpack.c.l.b16 %v253
    %v293 = vunpack.c.l.b16 %v254
    %v294 = vunpack.c.l.b16 %v255
    %v295 = vunpack.c.l.b16 %v256
    %v296 = vunpack.c.l.b16 %v257
    %v297 = vunpack.c.l.b16 %v258
    %v298 = vunpack.c.l.b16 %v259
    %v299 = vunpack.c.l.b16 %v260
    %v300 = vpack.c.b16 %v285, %v284
    %v301 = vpack.c.b16 %v287, %v286
    %v302 = vpack.c.b16 %v289, %v288
    %v303 = vpack.c.b16 %v291, %v290
    %v304 = vpack.c.b16 %v293, %v292
    %v305 = vpack.c.b16 %v295, %v294
    %v306 = vpack.c.b16 %v297, %v296
    %v307 = vpack.c.b16 %v299, %v298
    %316 = vmatprep.subr.bf16.mxu0 0
    %317 = vmatpush1.bf16.msra.mxu0 %v300
    %318 = vmatprep.subr.bf16.mxu0 0
    %319 = vmatpush1.bf16.msra.mxu0 %v301
    %320 = vmatprep.subr.bf16.mxu0 0
    %321 = vmatpush1.bf16.msra.mxu0 %v302
    %322 = vmatprep.subr.bf16.mxu0 0
    %323 = vmatpush1.bf16.msra.mxu0 %v303
    %324 = vmatprep.subr.bf16.mxu0 0
    %325 = vmatpush1.bf16.msra.mxu0 %v304
    %326 = vmatprep.subr.bf16.mxu0 0
    %327 = vmatpush1.bf16.msra.mxu0 %v305
    %328 = vmatprep.subr.bf16.mxu0 0
    %329 = vmatpush1.bf16.msra.mxu0 %v306
    %330 = vmatprep.subr.bf16.mxu0 0
    %331 = vmatpush1.bf16.msra.mxu0 %v307
    %332 = vmatprep.subr.bf16.mxu0 0
    %333 = vmatpush1.bf16.msra.mxu0 0
    %334 = vmatprep.subr.bf16.mxu0 0
    %335 = vmatpush1.bf16.msra.mxu0 0
    %336 = vmatprep.subr.bf16.mxu0 0
    %337 = vmatpush1.bf16.msra.mxu0 0
    %338 = vmatprep.subr.bf16.mxu0 0
    %339 = vmatpush1.bf16.msra.mxu0 0
    %340 = vmatprep.subr.bf16.mxu0 0
    %341 = vmatpush1.bf16.msra.mxu0 0
    %342 = vmatprep.subr.bf16.mxu0 0
    %343 = vmatpush1.bf16.msra.mxu0 0
    %344 = vmatprep.subr.bf16.mxu0 0
    %345 = vmatpush1.bf16.msra.mxu0 0
    %346 = vmatprep.subr.bf16.mxu0 0
    %347 = vmatpush1.bf16.msra.mxu0 0
    %348 = vmatprep.mubr.bf16.mxu0 0
    %349 = vmatmul.mubr.bf16.gmra.mrb[0].mxu0 %v244
    %v350 = vpop.f32.mrb[0].mxu0
    %v351 = vadd.f32 %v266, %v350
    %v352 = vpop.f32.mrb[0].mxu0
    %v353 = vpop.f32.mrb[0].mxu0
    %v354 = vpop.f32.mrb[0].mxu0
    %355 = vdwg.mxu0
    %v356 = vmax.f32 %v351, 0.0
    %v357 = vpack.c.bf16 %v356, %v356
    %v358 = vld [vmem:[#allocation5] sm:$0xf]
    %v359 = vld [vmem:[#allocation5 + $0x4] sm:$0xf]
    %v360 = vld [vmem:[#allocation5 + $0x8] sm:$0xf]
    %v361 = vld [vmem:[#allocation5 + $0xc] sm:$0xf]
    %v362 = vld [vmem:[#allocation5 + $0x10] sm:$0xf]
    %v363 = vld [vmem:[#allocation5 + $0x14] sm:$0xf]
    %v364 = vld [vmem:[#allocation5 + $0x18] sm:$0xf]
    %v365 = vld [vmem:[#allocation5 + $0x1c] sm:$0xf]
    %v366 = vld [vmem:[#allocation5 + $0x20] sm:$0xf]
    %v367 = vld [vmem:[#allocation5 + $0x24] sm:$0xf]
    %v368 = vld [vmem:[#allocation5 + $0x28] sm:$0xf]
    %v369 = vld [vmem:[#allocation5 + $0x2c] sm:$0xf]
    %v370 = vld [vmem:[#allocation5 + $0x30] sm:$0xf]
    %v371 = vld [vmem:[#allocation5 + $0x34] sm:$0xf]
    %v372 = vld [vmem:[#allocation5 + $0x38] sm:$0xf]
    %v373 = vld [vmem:[#allocation5 + $0x3c] sm:$0xf]
    %v374 = vld [vmem:[%s7] sm:$0x1]
    %v376 = vlaneseq
    %v377 = vshrl.u32 %v376, 7
    %v378 = vsub.s32 0, %v377
    %v379 = vrot.slane %v374, %v378
    %v397 = vunpack.c.l.b16 %v358
    %v398 = vunpack.c.l.b16 %v359
    %v399 = vunpack.c.l.b16 %v360
    %v400 = vunpack.c.l.b16 %v361
    %v401 = vunpack.c.l.b16 %v362
    %v402 = vunpack.c.l.b16 %v363
    %v403 = vunpack.c.l.b16 %v364
    %v404 = vunpack.c.l.b16 %v365
    %v405 = vunpack.c.l.b16 %v366
    %v406 = vunpack.c.l.b16 %v367
    %v407 = vunpack.c.l.b16 %v368
    %v408 = vunpack.c.l.b16 %v369
    %v409 = vunpack.c.l.b16 %v370
    %v410 = vunpack.c.l.b16 %v371
    %v411 = vunpack.c.l.b16 %v372
    %v412 = vunpack.c.l.b16 %v373
    %v413 = vpack.c.b16 %v398, %v397
    %v414 = vpack.c.b16 %v400, %v399
    %v415 = vpack.c.b16 %v402, %v401
    %v416 = vpack.c.b16 %v404, %v403
    %v417 = vpack.c.b16 %v406, %v405
    %v418 = vpack.c.b16 %v408, %v407
    %v419 = vpack.c.b16 %v410, %v409
    %v420 = vpack.c.b16 %v412, %v411
    %429 = vmatprep.subr.bf16.mxu0 0
    %430 = vmatpush1.bf16.msra.mxu0 %v413
    %431 = vmatprep.subr.bf16.mxu0 0
    %432 = vmatpush1.bf16.msra.mxu0 %v414
    %433 = vmatprep.subr.bf16.mxu0 0
    %434 = vmatpush1.bf16.msra.mxu0 %v415
    %435 = vmatprep.subr.bf16.mxu0 0
    %436 = vmatpush1.bf16.msra.mxu0 %v416
    %437 = vmatprep.subr.bf16.mxu0 0
    %438 = vmatpush1.bf16.msra.mxu0 %v417
    %439 = vmatprep.subr.bf16.mxu0 0
    %440 = vmatpush1.bf16.msra.mxu0 %v418
    %441 = vmatprep.subr.bf16.mxu0 0
    %442 = vmatpush1.bf16.msra.mxu0 %v419
    %443 = vmatprep.subr.bf16.mxu0 0
    %444 = vmatpush1.bf16.msra.mxu0 %v420
    %445 = vmatprep.subr.bf16.mxu0 0
    %446 = vmatpush1.bf16.msra.mxu0 0
    %447 = vmatprep.subr.bf16.mxu0 0
    %448 = vmatpush1.bf16.msra.mxu0 0
    %449 = vmatprep.subr.bf16.mxu0 0
    %450 = vmatpush1.bf16.msra.mxu0 0
    %451 = vmatprep.subr.bf16.mxu0 0
    %452 = vmatpush1.bf16.msra.mxu0 0
    %453 = vmatprep.subr.bf16.mxu0 0
    %454 = vmatpush1.bf16.msra.mxu0 0
    %455 = vmatprep.subr.bf16.mxu0 0
    %456 = vmatpush1.bf16.msra.mxu0 0
    %457 = vmatprep.subr.bf16.mxu0 0
    %458 = vmatpush1.bf16.msra.mxu0 0
    %459 = vmatprep.subr.bf16.mxu0 0
    %460 = vmatpush1.bf16.msra.mxu0 0
    %461 = vmatprep.mubr.bf16.mxu0 0
    %462 = vmatmul.mubr.bf16.gmra.mrb[0].mxu0 %v357
    %v463 = vpop.f32.mrb[0].mxu0
    %v464 = vadd.f32 %v379, %v463
    %v465 = vpop.f32.mrb[0].mxu0
    %v466 = vpop.f32.mrb[0].mxu0
    %v467 = vpop.f32.mrb[0].mxu0
    %468 = vdwg.mxu0
    %v469 = vmax.f32 %v464, 0.0
    %v470 = vpack.c.bf16 %v469, %v469
    %v471 = vld [vmem:[#allocation7] sm:$0xf]
    %v472 = vld [vmem:[#allocation7 + $0x4] sm:$0xf]
    %v473 = vld [vmem:[#allocation7 + $0x8] sm:$0xf]
    %v474 = vld [vmem:[#allocation7 + $0xc] sm:$0xf]
    %v475 = vld [vmem:[#allocation7 + $0x10] sm:$0xf]
    %v476 = vld [vmem:[#allocation7 + $0x14] sm:$0xf]
    %v477 = vld [vmem:[#allocation7 + $0x18] sm:$0xf]
    %v478 = vld [vmem:[#allocation7 + $0x1c] sm:$0xf]
    %v479 = vld [vmem:[#allocation7 + $0x20] sm:$0xf]
    %v480 = vld [vmem:[#allocation7 + $0x24] sm:$0xf]
    %v481 = vld [vmem:[#allocation7 + $0x28] sm:$0xf]
    %v482 = vld [vmem:[#allocation7 + $0x2c] sm:$0xf]
    %v483 = vld [vmem:[#allocation7 + $0x30] sm:$0xf]
    %v484 = vld [vmem:[#allocation7 + $0x34] sm:$0xf]
    %v485 = vld [vmem:[#allocation7 + $0x38] sm:$0xf]
    %v486 = vld [vmem:[#allocation7 + $0x3c] sm:$0xf]
    %v487 = vld [vmem:[%s9] sm:$0x1]
    %v489 = vlaneseq
    %v490 = vshrl.u32 %v489, 7
    %v491 = vsub.s32 0, %v490
    %v492 = vrot.slane %v487, %v491
    %v510 = vunpack.c.l.b16 %v471
    %v511 = vunpack.c.l.b16 %v472
    %v512 = vunpack.c.l.b16 %v473
    %v513 = vunpack.c.l.b16 %v474
    %v514 = vunpack.c.l.b16 %v475
    %v515 = vunpack.c.l.b16 %v476
    %v516 = vunpack.c.l.b16 %v477
    %v517 = vunpack.c.l.b16 %v478
    %v518 = vunpack.c.l.b16 %v479
    %v519 = vunpack.c.l.b16 %v480
    %v520 = vunpack.c.l.b16 %v481
    %v521 = vunpack.c.l.b16 %v482
    %v522 = vunpack.c.l.b16 %v483
    %v523 = vunpack.c.l.b16 %v484
    %v524 = vunpack.c.l.b16 %v485
    %v525 = vunpack.c.l.b16 %v486
    %v526 = vpack.c.b16 %v511, %v510
    %v527 = vpack.c.b16 %v513, %v512
    %v528 = vpack.c.b16 %v515, %v514
    %v529 = vpack.c.b16 %v517, %v516
    %v530 = vpack.c.b16 %v519, %v518
    %v531 = vpack.c.b16 %v521, %v520
    %v532 = vpack.c.b16 %v523, %v522
    %v533 = vpack.c.b16 %v525, %v524
    %542 = vmatprep.subr.bf16.mxu0 0
    %543 = vmatpush1.bf16.msra.mxu0 %v526
    %544 = vmatprep.subr.bf16.mxu0 0
    %545 = vmatpush1.bf16.msra.mxu0 %v527
    %546 = vmatprep.subr.bf16.mxu0 0
    %547 = vmatpush1.bf16.msra.mxu0 %v528
    %548 = vmatprep.subr.bf16.mxu0 0
    %549 = vmatpush1.bf16.msra.mxu0 %v529
    %550 = vmatprep.subr.bf16.mxu0 0
    %551 = vmatpush1.bf16.msra.mxu0 %v530
    %552 = vmatprep.subr.bf16.mxu0 0
    %553 = vmatpush1.bf16.msra.mxu0 %v531
    %554 = vmatprep.subr.bf16.mxu0 0
    %555 = vmatpush1.bf16.msra.mxu0 %v532
    %556 = vmatprep.subr.bf16.mxu0 0
    %557 = vmatpush1.bf16.msra.mxu0 %v533
    %558 = vmatprep.subr.bf16.mxu0 0
    %559 = vmatpush1.bf16.msra.mxu0 0
    %560 = vmatprep.subr.bf16.mxu0 0
    %561 = vmatpush1.bf16.msra.mxu0 0
    %562 = vmatprep.subr.bf16.mxu0 0
    %563 = vmatpush1.bf16.msra.mxu0 0
    %564 = vmatprep.subr.bf16.mxu0 0
    %565 = vmatpush1.bf16.msra.mxu0 0
    %566 = vmatprep.subr.bf16.mxu0 0
    %567 = vmatpush1.bf16.msra.mxu0 0
    %568 = vmatprep.subr.bf16.mxu0 0
    %569 = vmatpush1.bf16.msra.mxu0 0
    %570 = vmatprep.subr.bf16.mxu0 0
    %571 = vmatpush1.bf16.msra.mxu0 0
    %572 = vmatprep.subr.bf16.mxu0 0
    %573 = vmatpush1.bf16.msra.mxu0 0
    %574 = vmatprep.mubr.bf16.mxu0 0
    %575 = vmatmul.mubr.bf16.gmra.mrb[0].mxu0 %v470
    %v576 = vpop.f32.mrb[0].mxu0
    %v577 = vadd.f32 %v492, %v576
    %v578 = vpop.f32.mrb[0].mxu0
    %v579 = vpop.f32.mrb[0].mxu0
    %v580 = vpop.f32.mrb[0].mxu0
    %581 = vdwg.mxu0
    %v582 = vmax.f32 %v577, 0.0
    %v583 = vpack.c.bf16 %v582, %v582
    %v584 = vld [vmem:[#allocation8] sm:$0xf]
    %v585 = vld [vmem:[#allocation8 + $0x4] sm:$0xf]
    %v586 = vld [vmem:[#allocation8 + $0x8] sm:$0xf]
    %v587 = vld [vmem:[#allocation8 + $0xc] sm:$0xf]
    %v588 = vld [vmem:[#allocation8 + $0x10] sm:$0xf]
    %v589 = vld [vmem:[#allocation8 + $0x14] sm:$0xf]
    %v590 = vld [vmem:[#allocation8 + $0x18] sm:$0xf]
    %v591 = vld [vmem:[#allocation8 + $0x1c] sm:$0xf]
    %v592 = vld [vmem:[#allocation8 + $0x20] sm:$0xf]
    %v593 = vld [vmem:[#allocation8 + $0x24] sm:$0xf]
    %v594 = vld [vmem:[#allocation8 + $0x28] sm:$0xf]
    %v595 = vld [vmem:[#allocation8 + $0x2c] sm:$0xf]
    %v596 = vld [vmem:[#allocation8 + $0x30] sm:$0xf]
    %v597 = vld [vmem:[#allocation8 + $0x34] sm:$0xf]
    %v598 = vld [vmem:[#allocation8 + $0x38] sm:$0xf]
    %v599 = vld [vmem:[#allocation8 + $0x3c] sm:$0xf]
    %v600 = vld [vmem:[%s11] sm:$0x1]
    %v602 = vlaneseq
    %v603 = vshrl.u32 %v602, 7
    %v604 = vsub.s32 0, %v603
    %v605 = vrot.slane %v600, %v604
    %v623 = vunpack.c.l.b16 %v584
    %v624 = vunpack.c.l.b16 %v585
    %v625 = vunpack.c.l.b16 %v586
    %v626 = vunpack.c.l.b16 %v587
    %v627 = vunpack.c.l.b16 %v588
    %v628 = vunpack.c.l.b16 %v589
    %v629 = vunpack.c.l.b16 %v590
    %v630 = vunpack.c.l.b16 %v591
    %v631 = vunpack.c.l.b16 %v592
    %v632 = vunpack.c.l.b16 %v593
    %v633 = vunpack.c.l.b16 %v594
    %v634 = vunpack.c.l.b16 %v595
    %v635 = vunpack.c.l.b16 %v596
    %v636 = vunpack.c.l.b16 %v597
    %v637 = vunpack.c.l.b16 %v598
    %v638 = vunpack.c.l.b16 %v599
    %v639 = vpack.c.b16 %v624, %v623
    %v640 = vpack.c.b16 %v626, %v625
    %v641 = vpack.c.b16 %v628, %v627
    %v642 = vpack.c.b16 %v630, %v629
    %v643 = vpack.c.b16 %v632, %v631
    %v644 = vpack.c.b16 %v634, %v633
    %v645 = vpack.c.b16 %v636, %v635
    %v646 = vpack.c.b16 %v638, %v637
    %655 = vmatprep.subr.bf16.mxu0 0
    %656 = vmatpush1.bf16.msra.mxu0 %v639
    %657 = vmatprep.subr.bf16.mxu0 0
    %658 = vmatpush1.bf16.msra.mxu0 %v640
    %659 = vmatprep.subr.bf16.mxu0 0
    %660 = vmatpush1.bf16.msra.mxu0 %v641
    %661 = vmatprep.subr.bf16.mxu0 0
    %662 = vmatpush1.bf16.msra.mxu0 %v642
    %663 = vmatprep.subr.bf16.mxu0 0
    %664 = vmatpush1.bf16.msra.mxu0 %v643
    %665 = vmatprep.subr.bf16.mxu0 0
    %666 = vmatpush1.bf16.msra.mxu0 %v644
    %667 = vmatprep.subr.bf16.mxu0 0
    %668 = vmatpush1.bf16.msra.mxu0 %v645
    %669 = vmatprep.subr.bf16.mxu0 0
    %670 = vmatpush1.bf16.msra.mxu0 %v646
    %671 = vmatprep.subr.bf16.mxu0 0
    %672 = vmatpush1.bf16.msra.mxu0 0
    %673 = vmatprep.subr.bf16.mxu0 0
    %674 = vmatpush1.bf16.msra.mxu0 0
    %675 = vmatprep.subr.bf16.mxu0 0
    %676 = vmatpush1.bf16.msra.mxu0 0
    %677 = vmatprep.subr.bf16.mxu0 0
    %678 = vmatpush1.bf16.msra.mxu0 0
    %679 = vmatprep.subr.bf16.mxu0 0
    %680 = vmatpush1.bf16.msra.mxu0 0
    %681 = vmatprep.subr.bf16.mxu0 0
    %682 = vmatpush1.bf16.msra.mxu0 0
    %683 = vmatprep.subr.bf16.mxu0 0
    %684 = vmatpush1.bf16.msra.mxu0 0
    %685 = vmatprep.subr.bf16.mxu0 0
    %686 = vmatpush1.bf16.msra.mxu0 0
    %687 = vmatprep.mubr.bf16.mxu0 0
    %688 = vmatmul.mubr.bf16.gmra.mrb[0].mxu0 %v583
    %v689 = vpop.f32.mrb[0].mxu0
    %v690 = vadd.f32 %v605, %v689
    %v691 = vpop.f32.mrb[0].mxu0
    %v692 = vpop.f32.mrb[0].mxu0
    %v693 = vpop.f32.mrb[0].mxu0
    %694 = vdwg.mxu0
    %v695 = vpack.c.bf16 %v690, %v690
    %696 = vst [vmem:[#allocation10] sm:$0xf] %v695
    // Predicated region
    $region66: #{mlp_reconstruct_forward.1} parent=1 // pred_check
      _
    $region67: #{mlp_reconstruct_forward.1} parent=1 // pred_check_branch
      %698 = sbr.rel (0) target = $region69
    $region68: #{mlp_reconstruct_forward.1} parent=1 // pred_region
      %s700 = ssub.s32 64, 64
      %701 = vsyncadd [#allocation4], %s700
      %s703 = sshll.u32 [#allocation10], 4
      %s704 = int_to_ptr.vmem [resolvable:$true] %s703
      %706 = dma.vmem_to_hbm [thread:$0]  %s704, 64, %s12, [#allocation4]
    $region69: #{mlp_reconstruct_forward.1} parent=1 // pred_fallthru
      _
    // Predicated region
    $region70: #{mlp_reconstruct_forward.1} parent=1 // pred_check
      _
    $region71: #{mlp_reconstruct_forward.1} parent=1 // pred_check_branch
      %708 = sbr.rel (0) target = $region73
    $region72: #{mlp_reconstruct_forward.1} parent=1 // pred_region
      %709 = dma.done [#allocation4], 64
    $region73: #{mlp_reconstruct_forward.1} parent=1 // pred_fallthru
      _
    %710 = vsyncpa [#allocation3], 1
    %711 = vsyncpa [#allocation6], 1
    %712 = vsyncpa [#allocation9], 1
    %713 = vsyncpa [#allocation4], 1

</llo_original>
